<compile_context>
chip_gen: v5e
topology: v5e:2x2
jax: 0.10.0
libtpu: 0.0.40
codegen_flags: <defaults>
</compile_context>

<pallas_src>
import functools

import jax
import jax.numpy as jnp
from jax import lax
from jax.experimental import pallas as pl
from jax.experimental.pallas import tpu as pltpu


def _round_up(x, m):
    return ((x + m - 1) // m) * m


def _mmd_tile_kernel(im_ref, jm_ref, zi_ref, zj_ref, rp_ref, cp_ref, out_ref,
                     acc_ref, *, gamma, nk):
    """One (tm, tn) tile (one feature chunk) of the weighted RBF-kernel sum.

    im_ref/jm_ref : (T,) SMEM   step -> (row block, col block) of the triangle
    zi_ref        : (tm, dk)    bf16 row tile of concatenated embeddings
    zj_ref        : (tn, dk)    bf16 col tile
    rp_ref        : (tm, 2)     f32  packed [-gamma*||x_i||^2, s_i]
    cp_ref        : (2, tn)     f32  packed [-gamma*||x_j||^2 ; s_j]
    out_ref       : (1, 1, tn)  lane-dense per-step partial sums (reduced in JAX)
    acc_ref       : (tm, tn)    f32 cross-term accumulator across feature chunks
    """
    t = pl.program_id(0)
    k = pl.program_id(1)

    # Cross term on the MXU (bf16 operands, f32 accumulation); contract the
    # feature dim of both operands directly -> no transpose relayout.
    cross = lax.dot_general(
        zi_ref[...], zj_ref[...],
        dimension_numbers=(((1,), (1,)), ((), ())),
        preferred_element_type=jnp.float32)                    # (tm, tn) f32

    if nk > 1:
        @pl.when(k == 0)
        def _():
            acc_ref[...] = cross

        @pl.when(k > 0)
        def _():
            acc_ref[...] += cross

    @pl.when(k == nk - 1)
    def _():
        total = cross if nk == 1 else acc_ref[...]
        gi = rp_ref[:, 0:1]        # (tm, 1)  -gamma * ||x_i||^2 (of bf16 values)
        wi = rp_ref[:, 1:2]        # (tm, 1)  signed weights s_i
        gj = cp_ref[0:1, :]        # (1, tn)
        wj = cp_ref[1:2, :]        # (1, tn)
        # exponent = -gamma*(||xi||^2 - 2 xi.xj + ||xj||^2); norms pre-scaled.
        expo = (2.0 * gamma) * total + gi + gj
        kmat = jnp.exp(expo)                                   # EUP
        # Weights via VPU broadcast + sublane reduce (no rank-1 MXU matmul).
        col_part = jnp.sum(kmat * wi, axis=0, keepdims=True) * wj   # (1, tn)
        i_blk = im_ref[t]
        j_blk = jm_ref[t]
        factor = jnp.where(j_blk > i_blk, 2.0, 1.0)   # double off-diagonal tiles
        out_ref[...] = (factor * col_part).reshape(1, 1, -1)


def mmd_loss(z_1, z_2, beta_1, beta_2, gamma=0.1, tile=256, d_chunk=4096,
             matmul_dtype=jnp.bfloat16):
    """Pallas MMD loss.  z_* may have trailing feature dims; they get flattened."""
    assert d_chunk % 128 == 0
    z1 = jnp.asarray(z_1, jnp.float32).reshape(z_1.shape[0], -1)
    z2 = jnp.asarray(z_2, jnp.float32).reshape(z_2.shape[0], -1)
    b1 = jnp.asarray(beta_1, jnp.float32).reshape(-1)
    b2 = jnp.asarray(beta_2, jnp.float32).reshape(-1)

    # Fold the three terms into one symmetric kernel: x = [z1; z2], s = [b1, -b2].
    z = jnp.concatenate([z1, z2], axis=0)
    s = jnp.concatenate([b1, -b2], axis=0)

    n, d = z.shape
    if n <= tile:
        tm = _round_up(max(n, 1), 8)          # single tile, sublane aligned
        n_pad = tm
    else:
        assert tile % 128 == 0                # lane-dense output / packed strips
        tm = tile                             # 256: MXU-native v6e/v7x, 2x128 v5e
        n_pad = _round_up(n, tile)
    tn = tm

    # Feature dim: lane-align; chunk it if it would blow the VMEM tile budget.
    d_al = _round_up(max(d, 1), 128)
    if d_al <= d_chunk:
        dk, d_pad = d_al, d_al
    else:
        dk = d_chunk
        d_pad = _round_up(d, d_chunk)
    nk = d_pad // dk

    # Zero padding: padded rows get weight 0, so they contribute nothing.
    z_p = jnp.pad(z, ((0, n_pad - n), (0, d_pad - d)))
    s_p = jnp.pad(s, (0, n_pad - n))

    # Narrow stream for the MXU (halves HBM traffic + z-tile VMEM).  Row norms
    # are taken from the *rounded* values so the diagonal exponent cancels
    # exactly; everything downstream of the dot stays f32.
    z_mx = z_p.astype(matmul_dtype)
    z_f = z_mx.astype(jnp.float32)
    g = (-float(gamma)) * jnp.sum(z_f * z_f, axis=1)           # (n_pad,)

    # Pack norm + signed weight into one pipeline per side.
    row_pack = jnp.stack([g, s_p], axis=1)                     # (n_pad, 2) f32
    col_pack = jnp.stack([g, s_p], axis=0)                     # (2, n_pad) f32

    nb = n_pad // tm
    # Upper-triangular schedule, i-major: the row tile / row_pack keep the same
    # block index across consecutive steps -> Pallas skips the re-DMA (revisit).
    i_list, j_list = [], []
    for i in range(nb):
        for j in range(i, nb):
            i_list.append(i)
            j_list.append(j)
    n_steps = len(i_list)                                      # nb*(nb+1)/2
    i_map = jnp.asarray(i_list, jnp.int32)
    j_map = jnp.asarray(j_list, jnp.int32)

    kernel = functools.partial(_mmd_tile_kernel, gamma=float(gamma), nk=nk)

    # Advisory cost estimate for the triangular sweep.
    flops = n_steps * (2 * tm * tn * d_pad + 6 * tm * tn)
    elt = jnp.dtype(matmul_dtype).itemsize
    bytes_accessed = (n_steps * nk * (tm + tn) * dk * elt
                      + n_steps * (2 * tm + 2 * tn) * 4
                      + n_steps * tn * 4)
    cost = pl.CostEstimate(flops=flops,
                           transcendentals=n_steps * tm * tn,
                           bytes_accessed=bytes_accessed)

    # Real double-buffered working set: 2 z inputs x 2 buffers x (tile, dk) in
    # the matmul dtype, lane-padded packed strips, output strip, f32 scratch.
    lane_pad = max(tn, 128)
    working = (2 * 2 * tm * dk * elt          # z row/col tiles, double-buffered
               + 2 * tm * 128 * 4             # row_pack (lane-padded)
               + 2 * 8 * lane_pad * 4         # col_pack (sublane-padded)
               + 2 * 8 * lane_pad * 4         # output strip
               + tm * tn * 4)                 # cross-term accumulator scratch
    # Cap below v7x's 64 MiB physical VMEM (leave headroom for compiler scratch).
    vmem_limit = int(min(48 * 1024 * 1024,
                         max(32 * 1024 * 1024, 2 * working + (4 << 20))))

    grid_spec = pltpu.PrefetchScalarGridSpec(
        num_scalar_prefetch=2,
        grid=(n_steps, nk),
        in_specs=[
            pl.BlockSpec((tm, dk), lambda t, k, im, jm: (im[t], k)),   # z rows
            pl.BlockSpec((tn, dk), lambda t, k, im, jm: (jm[t], k)),   # z cols
            pl.BlockSpec((tm, 2), lambda t, k, im, jm: (im[t], 0)),    # [g_i, s_i]
            pl.BlockSpec((2, tn), lambda t, k, im, jm: (0, jm[t])),    # [g_j; s_j]
        ],
        out_specs=pl.BlockSpec((1, 1, tn), lambda t, k, im, jm: (t, 0, 0)),
        scratch_shapes=[pltpu.VMEM((tm, tn), jnp.float32)],
    )

    partials = pl.pallas_call(
        kernel,
        grid_spec=grid_spec,
        out_shape=jax.ShapeDtypeStruct((n_steps, 1, tn), jnp.float32),
        compiler_params=pltpu.CompilerParams(
            # Triangular steps are equal cost -> balanced megacore split on v7x;
            # only the feature-chunk (reduction) axis is "arbitrary".
            dimension_semantics=("parallel", "arbitrary"),
            vmem_limit_bytes=vmem_limit),
        cost_estimate=cost,
    )(i_map, j_map, z_mx, z_mx, row_pack, col_pack)

    # Per-step f32 partial sums reduced outside the kernel.
    return jnp.sum(partials)


class MMDLoss:
    """Thin functional mirror of the PyTorch module."""

    def __init__(self, gamma: float = 0.1):
        self.gamma = gamma

    def __call__(self, z_1, z_2, beta_1, beta_2):
        return mmd_loss(z_1, z_2, beta_1, beta_2, gamma=self.gamma)


def _mmd_ref(z_1, z_2, beta_1, beta_2, gamma=0.1):
    """Pure-JAX reference (float32) for correctness checking."""
    z1 = jnp.asarray(z_1, jnp.float32).reshape(z_1.shape[0], -1)
    z2 = jnp.asarray(z_2, jnp.float32).reshape(z_2.shape[0], -1)
    b1 = jnp.asarray(beta_1, jnp.float32).reshape(1, -1)
    b2 = jnp.asarray(beta_2, jnp.float32).reshape(1, -1)

    def ip(za, zb, ba, bb):
        d = (jnp.sum(za**2, 1, keepdims=True) - 2.0 * za @ zb.T
             + jnp.sum(zb**2, 1, keepdims=True).T)
        return jnp.sum(jnp.exp(-d * gamma) * (ba.T @ bb))

    return ip(z1, z1, b1, b1) - 2.0 * ip(z1, z2, b1, b2) + ip(z2, z2, b2, b2)


if __name__ == "__main__":
    key = jax.random.PRNGKey(0)
    k1, k2, k3, k4 = jax.random.split(key, 4)

    # --- Test 1: small single-tile case (matches the module's typical use) ---
    N1, N2, D = 8, 16, 32
    z_1 = jax.random.normal(k1, (N1, D), dtype=jnp.float32)
    z_2 = jax.random.normal(k2, (N2, D), dtype=jnp.float32)
    beta_1 = jax.nn.softmax(jax.random.normal(k3, (N1,), dtype=jnp.float32))
    beta_2 = jax.nn.softmax(jax.random.normal(k4, (N2,), dtype=jnp.float32))

    out = mmd_loss(z_1, z_2, beta_1, beta_2, gamma=0.1)
    out = jax.block_until_ready(out)
    ref = _mmd_ref(z_1, z_2, beta_1, beta_2, gamma=0.1)
    # bf16 MXU operands vs f32 reference (PyTorch spec is f64 anyway): the
    # diagonal contribution is exact by construction, so the gap stays tiny.
    assert jnp.allclose(out, ref, rtol=1e-3, atol=1e-4), (out, ref)

    # --- Test 2: exercises the triangular multi-tile schedule, off-diagonal
    # doubling, padding on both dims, and the feature-chunk accumulation path.
    k5, k6, k7, k8 = jax.random.split(jax.random.PRNGKey(1), 4)
    M1, M2, D2 = 96, 80, 200
    w_1 = jax.random.normal(k5, (M1, D2), dtype=jnp.float32)
    w_2 = jax.random.normal(k6, (M2, D2), dtype=jnp.float32)
    c_1 = jax.nn.softmax(jax.random.normal(k7, (M1,), dtype=jnp.float32))
    c_2 = jax.nn.softmax(jax.random.normal(k8, (M2,), dtype=jnp.float32))

    out2 = mmd_loss(w_1, w_2, c_1, c_2, gamma=0.02, tile=128, d_chunk=128)
    out2 = jax.block_until_ready(out2)
    ref2 = _mmd_ref(w_1, w_2, c_1, c_2, gamma=0.02)
    assert jnp.allclose(out2, ref2, rtol=1e-3, atol=1e-4), (out2, ref2)

    print("KERNEL_OK")
</pallas_src>

<mosaic_0001>
module attributes {stable_mosaic.version = 11 : i64} {
  func.func @_mmd_tile_kernel(%arg0: i32, %arg1: i32, %arg2: memref<1xi32, #tpu.memory_space<smem>>, %arg3: memref<1xi32, #tpu.memory_space<smem>>, %arg4: memref<24x128xbf16, #tpu.memory_space<vmem>>, %arg5: memref<24x128xbf16, #tpu.memory_space<vmem>>, %arg6: memref<24x2xf32, #tpu.memory_space<vmem>>, %arg7: memref<2x24xf32, #tpu.memory_space<vmem>>, %arg8: memref<1x1x24xf32, #tpu.memory_space<vmem>>, %arg9: memref<24x24xf32, #tpu.memory_space<vmem>>) attributes {dimension_semantics = [#tpu.dimension_semantics<parallel>, #tpu.dimension_semantics<arbitrary>], iteration_bounds = array<i64: 1, 1>, scalar_prefetch = 2 : i64, scratch_operands = 1 : i64, tpu.core_type = #tpu.core_type<tc>, window_params = [{transform_indices = @transform_0, window_bounds = array<i64: 24, 128>}, {transform_indices = @transform_1, window_bounds = array<i64: 24, 128>}, {transform_indices = @transform_2, window_bounds = array<i64: 24, 2>}, {transform_indices = @transform_3, window_bounds = array<i64: 2, 24>}, {transform_indices = @transform_4, window_bounds = array<i64: 1, 1, 24>}]} {
    %c0 = arith.constant 0 : index
    %c0_0 = arith.constant 0 : index
    %0 = vector.load %arg4[%c0, %c0_0] : memref<24x128xbf16, #tpu.memory_space<vmem>>, vector<24x128xbf16>
    %c0_1 = arith.constant 0 : index
    %c0_2 = arith.constant 0 : index
    %1 = vector.load %arg5[%c0_1, %c0_2] : memref<24x128xbf16, #tpu.memory_space<vmem>>, vector<24x128xbf16>
    %cst = arith.constant dense<0.000000e+00> : vector<24x24xf32>
    %2 = tpu.matmul %0, %1, %cst {dimension_numbers = #tpu.dot_dimension_numbers<[1], [1], [0], [0], [0, 0, 1, 0], [], []>} : vector<24x128xbf16>, vector<24x128xbf16>, vector<24x24xf32> -> vector<24x24xf32>
    %c0_i32 = arith.constant 0 : i32
    %3 = arith.cmpi eq, %arg1, %c0_i32 : i32
    %4 = arith.extui %3 : i1 to i32
    %c0_i32_3 = arith.constant 0 : i32
    %5 = arith.cmpi ne, %4, %c0_i32_3 : i32
    scf.if %5 {
      %c0_4 = arith.constant 0 : index
      %c0_5 = arith.constant 0 : index
      %6 = vector.load %arg6[%c0_4, %c0_5] : memref<24x2xf32, #tpu.memory_space<vmem>>, vector<24x1xf32>
      %c0_6 = arith.constant 0 : index
      %c1 = arith.constant 1 : index
      %7 = vector.load %arg6[%c0_6, %c1] : memref<24x2xf32, #tpu.memory_space<vmem>>, vector<24x1xf32>
      %c0_7 = arith.constant 0 : index
      %c0_8 = arith.constant 0 : index
      %8 = vector.load %arg7[%c0_7, %c0_8] : memref<2x24xf32, #tpu.memory_space<vmem>>, vector<1x24xf32>
      %c1_9 = arith.constant 1 : index
      %c0_10 = arith.constant 0 : index
      %9 = vector.load %arg7[%c1_9, %c0_10] : memref<2x24xf32, #tpu.memory_space<vmem>>, vector<1x24xf32>
      %cst_11 = arith.constant 2.000000e-01 : f32
      %10 = vector.broadcast %cst_11 : f32 to vector<24x24xf32>
      %11 = arith.mulf %10, %2 : vector<24x24xf32>
      %12 = vector.broadcast %6 : vector<24x1xf32> to vector<24x24xf32>
      %13 = arith.addf %11, %12 : vector<24x24xf32>
      %14 = vector.broadcast %8 : vector<1x24xf32> to vector<24x24xf32>
      %15 = arith.addf %13, %14 : vector<24x24xf32>
      %16 = math.exp %15 : vector<24x24xf32>
      %17 = vector.broadcast %7 : vector<24x1xf32> to vector<24x24xf32>
      %18 = arith.mulf %16, %17 : vector<24x24xf32>
      %cst_12 = arith.constant dense<0.000000e+00> : vector<24xf32>
      %19 = vector.multi_reduction <add>, %18, %cst_12 [0] : vector<24x24xf32> to vector<24xf32>
      %20 = vector.shape_cast %19 : vector<24xf32> to vector<1x24xf32>
      %21 = arith.mulf %20, %9 : vector<1x24xf32>
      %22 = arith.index_cast %arg0 : i32 to index
      %23 = memref.load %arg2[%22] : memref<1xi32, #tpu.memory_space<smem>>
      %24 = arith.index_cast %arg0 : i32 to index
      %25 = memref.load %arg3[%24] : memref<1xi32, #tpu.memory_space<smem>>
      %26 = arith.cmpi sgt, %25, %23 : i32
      %cst_13 = arith.constant 2.000000e+00 : f32
      %cst_14 = arith.constant 1.000000e+00 : f32
      %27 = arith.select %26, %cst_13, %cst_14 : f32
      %28 = vector.broadcast %27 : f32 to vector<1x24xf32>
      %29 = arith.mulf %28, %21 : vector<1x24xf32>
      %30 = vector.shape_cast %29 : vector<1x24xf32> to vector<1x1x24xf32>
      %c0_15 = arith.constant 0 : index
      %c0_16 = arith.constant 0 : index
      %c0_17 = arith.constant 0 : index
      %31 = vector.load %arg8[%c0_15, %c0_16, %c0_17] : memref<1x1x24xf32, #tpu.memory_space<vmem>>, vector<1x1x24xf32>
      tpu.vector_store %arg8[%c0_15, %c0_16, %c0_17], %30 {strides = array<i32>} : memref<1x1x24xf32, #tpu.memory_space<vmem>>, vector<1x1x24xf32>,
    } else {
    }
    return
  }
  func.func @transform_0(%arg0: i32, %arg1: i32, %arg2: memref<1xi32, #tpu.memory_space<smem>>, %arg3: memref<1xi32, #tpu.memory_space<smem>>) -> (i32, i32) {
    %0 = arith.index_cast %arg0 : i32 to index
    %1 = memref.load %arg2[%0] : memref<1xi32, #tpu.memory_space<smem>>
    %c0_i32 = arith.constant 0 : i32
    return %1, %arg1 : i32, i32
  }
  func.func @transform_1(%arg0: i32, %arg1: i32, %arg2: memref<1xi32, #tpu.memory_space<smem>>, %arg3: memref<1xi32, #tpu.memory_space<smem>>) -> (i32, i32) {
    %0 = arith.index_cast %arg0 : i32 to index
    %1 = memref.load %arg3[%0] : memref<1xi32, #tpu.memory_space<smem>>
    %c0_i32 = arith.constant 0 : i32
    return %1, %arg1 : i32, i32
  }
  func.func @transform_2(%arg0: i32, %arg1: i32, %arg2: memref<1xi32, #tpu.memory_space<smem>>, %arg3: memref<1xi32, #tpu.memory_space<smem>>) -> (i32, i32) {
    %0 = arith.index_cast %arg0 : i32 to index
    %1 = memref.load %arg2[%0] : memref<1xi32, #tpu.memory_space<smem>>
    %c0_i32 = arith.constant 0 : i32
    %c0_i32_0 = arith.constant 0 : i32
    return %1, %c0_i32 : i32, i32
  }
  func.func @transform_3(%arg0: i32, %arg1: i32, %arg2: memref<1xi32, #tpu.memory_space<smem>>, %arg3: memref<1xi32, #tpu.memory_space<smem>>) -> (i32, i32) {
    %0 = arith.index_cast %arg0 : i32 to index
    %1 = memref.load %arg3[%0] : memref<1xi32, #tpu.memory_space<smem>>
    %c0_i32 = arith.constant 0 : i32
    %c0_i32_0 = arith.constant 0 : i32
    return %c0_i32, %1 : i32, i32
  }
  func.func @transform_4(%arg0: i32, %arg1: i32, %arg2: memref<1xi32, #tpu.memory_space<smem>>, %arg3: memref<1xi32, #tpu.memory_space<smem>>) -> (i32, i32, i32) {
    %c0_i32 = arith.constant 0 : i32
    %c0_i32_0 = arith.constant 0 : i32
    %c0_i32_1 = arith.constant 0 : i32
    return %arg0, %c0_i32, %c0_i32_0 : i32, i32, i32
  }
}

</mosaic_0001>

<llo_original>
// kernel: tpu_custom_call.1
$region0: #{tpu_custom_call.1}
  #allocation0 [shape = 'u32[]', space=smem, size = 0x4, offset = 0x4, fixed_abs, tag = 'smem constant byte address 0x4 - core index']
  #allocation1 [shape = 'u32[72,128]{1,0:T(1,128)}', space=vmem, size = 0x9000, scoped, tag = 'internal scratch']
  #allocation2 [shape = 'f32[24,24]{1,0:T(8,128)}', space=vmem, size = 0x3000, scoped, tag = 'scratch operand']
  #allocation3 [shape = 's32[1]{0}', space=sflag, size = 0x4, scoped, tag = 'scoped memory for tpu_custom_call.1']
  #allocation4 [shape = 's32[1]{0:T(128)S(6)}', space=smem, size = 0x200, scoped, tag = 'prefetched SMEM operand 0']
  #allocation5 [shape = 's32[1]{0:T(128)S(6)}', space=smem, size = 0x200, scoped, tag = 'prefetched SMEM operand 1']
  %s0 = inlined_call_operand.<no memory space> [shape: s32[1], index: 0, kind: input, shape index: {}]
  %s1 = inlined_call_operand.<no memory space> [shape: s32[1], index: 1, kind: input, shape index: {}]
  %s2 = inlined_call_operand.vmem [shape: bf16[24,128], index: 2, kind: input, shape index: {}]
  %s3 = inlined_call_operand.vmem [shape: bf16[24,128], index: 3, kind: input, shape index: {}]
  %s4 = inlined_call_operand.vmem [shape: f32[24,2], index: 4, kind: input, shape index: {}]
  %s5 = inlined_call_operand.vmem [shape: f32[2,24], index: 5, kind: input, shape index: {}]
  %s6 = inlined_call_operand.hbm [shape: f32[1,1,24], index: 6, kind: output, shape index: {}]
  %s7 = sld [smem:[#allocation0]]
  $region30: #{tpu_custom_call.1} parent=0
    _
  %s9 = ssub.s32 1, %s7
  %s10 = scalar_select 0, %s9, %s7
  %11 = sst [smem:[#allocation4]] %s0
  %12 = sst [smem:[#allocation5]] %s1
  $region1: #{tpu_custom_call.1} parent=0
    #allocation6 [shape = 'u8[512]{0}', space=vmem, size = 0x400, scoped, tag = 'output window, operand 0, single buffered']
    #allocation7 [shape = 's32[1]{0}', space=sflag, size = 0x4, scoped, tag = 'scoped memory for tpu_custom_call.1']
    %13 = vsyncpa [#allocation7], 0
    // Predicated region
    $region2: #{tpu_custom_call.1} parent=1 // pred_check
      _
    $region3: #{tpu_custom_call.1} parent=1 // pred_check_branch
      %15 = sbr.rel (0) target = $region5
    $region4: #{tpu_custom_call.1} parent=1 // pred_region
      %s16 = sld [smem:[#allocation4]]
      %s17 = smul.u32 3, %s16
      %p18 = scmp.lt.s32.totalorder %s17, 2
      %s19 = scalar_select %p18, %s17, 2
      %s20 = smul.addr %s19, 4
      %s21 = scalar_lea.vmem %s2, %s20
      %s22 = sld [smem:[#allocation4]]
      %s23 = smul.u32 3, %s22
    $region5: #{tpu_custom_call.1} parent=1 // pred_fallthru
      _
    // Predicated region
    $region6: #{tpu_custom_call.1} parent=1 // pred_check
      _
    $region7: #{tpu_custom_call.1} parent=1 // pred_check_branch
      %25 = sbr.rel (0) target = $region9
    $region8: #{tpu_custom_call.1} parent=1 // pred_region
      %s26 = sld [smem:[#allocation5]]
      %s27 = smul.u32 3, %s26
      %p28 = scmp.lt.s32.totalorder %s27, 2
      %s29 = scalar_select %p28, %s27, 2
      %s30 = smul.addr %s29, 4
      %s31 = scalar_lea.vmem %s3, %s30
      %s32 = sld [smem:[#allocation5]]
      %s33 = smul.u32 3, %s32
    $region9: #{tpu_custom_call.1} parent=1 // pred_fallthru
      _
    // Predicated region
    $region10: #{tpu_custom_call.1} parent=1 // pred_check
      _
    $region11: #{tpu_custom_call.1} parent=1 // pred_check_branch
      %35 = sbr.rel (0) target = $region13
    $region12: #{tpu_custom_call.1} parent=1 // pred_region
      %s36 = sld [smem:[#allocation4]]
      %s37 = smul.u32 3, %s36
      %p38 = scmp.lt.s32.totalorder %s37, 2
      %s39 = scalar_select %p38, %s37, 2
      %s40 = smul.addr %s39, 8
      %s41 = scalar_lea.vmem %s4, %s40
      %s42 = sld [smem:[#allocation4]]
      %s43 = smul.u32 3, %s42
    $region13: #{tpu_custom_call.1} parent=1 // pred_fallthru
      _
    // Predicated region
    $region14: #{tpu_custom_call.1} parent=1 // pred_check
      _
    $region15: #{tpu_custom_call.1} parent=1 // pred_check_branch
      %45 = sbr.rel (0) target = $region17
    $region16: #{tpu_custom_call.1} parent=1 // pred_region
      %s46 = sld [smem:[#allocation5]]
      %p47 = scmp.lt.s32.totalorder %s46, 0
      %s48 = scalar_select %p47, %s46, 0
      %s49 = smul.addr %s48, 2
      %s50 = scalar_lea.vmem %s5, %s49
      %s51 = sld [smem:[#allocation5]]
    $region17: #{tpu_custom_call.1} parent=1 // pred_fallthru
      _
    %s52 = sld [smem:[#allocation4]]
    %s53 = smul.u32 3, %s52
    %p54 = scmp.lt.s32.totalorder %s53, 2
    %s55 = scalar_select %p54, %s53, 2
    %s56 = smul.addr %s55, 4
    %s57 = scalar_lea.vmem %s2, %s56
    %s58 = sld [smem:[#allocation5]]
    %s59 = smul.u32 3, %s58
    %p60 = scmp.lt.s32.totalorder %s59, 2
    %s61 = scalar_select %p60, %s59, 2
    %s62 = smul.addr %s61, 4
    %s63 = scalar_lea.vmem %s3, %s62
    %s64 = sld [smem:[#allocation4]]
    %s65 = smul.u32 3, %s64
    %p66 = scmp.lt.s32.totalorder %s65, 2
    %s67 = scalar_select %p66, %s65, 2
    %s68 = smul.addr %s67, 8
    %s69 = scalar_lea.vmem %s4, %s68
    %s70 = sld [smem:[#allocation5]]
    %p71 = scmp.lt.s32.totalorder %s70, 0
    %s72 = scalar_select %p71, %s70, 0
    %s73 = smul.addr %s72, 2
    %s74 = scalar_lea.vmem %s5, %s73
    %s75 = sld [smem:[#allocation4]]
    %s76 = smul.u32 3, %s75
    %p77 = scmp.lt.s32.totalorder %s76, 2
    %s78 = scalar_select %p77, %s76, 2
    %s79 = smul.addr %s78, 4
    %s80 = scalar_lea.vmem %s2, %s79
    %s81 = sld [smem:[#allocation4]]
    %s82 = smul.u32 3, %s81
    %s83 = sld [smem:[#allocation5]]
    %s84 = smul.u32 3, %s83
    %p85 = scmp.lt.s32.totalorder %s84, 2
    %s86 = scalar_select %p85, %s84, 2
    %s87 = smul.addr %s86, 4
    %s88 = scalar_lea.vmem %s3, %s87
    %s89 = sld [smem:[#allocation5]]
    %s90 = smul.u32 3, %s89
    %s91 = sld [smem:[#allocation4]]
    %s92 = smul.u32 3, %s91
    %p93 = scmp.lt.s32.totalorder %s92, 2
    %s94 = scalar_select %p93, %s92, 2
    %s95 = smul.addr %s94, 8
    %s96 = scalar_lea.vmem %s4, %s95
    %s97 = sld [smem:[#allocation4]]
    %s98 = smul.u32 3, %s97
    %s99 = sld [smem:[#allocation5]]
    %p100 = scmp.lt.s32.totalorder %s99, 0
    %s101 = scalar_select %p100, %s99, 0
    %s102 = smul.addr %s101, 2
    %s103 = scalar_lea.vmem %s5, %s102
    %s104 = sld [smem:[#allocation5]]
    %v106 = vld [vmem:[%s80] sm:$0xf]
    %v107 = vld [vmem:[%s80 + $0x4] sm:$0xf]
    %v108 = vld [vmem:[%s80 + $0x8] sm:$0xf]
    %v109 = vld [vmem:[%s88] sm:$0xf]
    %v110 = vld [vmem:[%s88 + $0x4] sm:$0xf]
    %v111 = vld [vmem:[%s88 + $0x8] sm:$0xf]
    %v115 = vunpack.c.l.b16 %v106
    %v116 = vunpack.c.l.b16 %v107
    %v117 = vunpack.c.l.b16 %v108
    %v118 = vpack.c.b16 %v116, %v115
    %v119 = vpack.c.b16 %v117, %v117
    %v125 = vunpack.c.l.b16 %v109
    %v126 = vunpack.c.l.b16 %v110
    %v127 = vunpack.c.l.b16 %v111
    %v128 = vpack.c.b16 %v126, %v125
    %v129 = vpack.c.b16 %v127, %v127
    %132 = vmatpush.bf16.xpose.msra.mxu0 0
    %133 = vmatpush.bf16.xpose.msra.mxu0 0
    %134 = vmatpush.bf16.xpose.msra.mxu0 0
    %135 = vmatpush.bf16.xpose.msra.mxu0 0
    %136 = vmatpush.bf16.xpose.msra.mxu0 0
    %137 = vmatpush.bf16.xpose.msra.mxu0 0
    %138 = vmatpush.bf16.xpose.msra.mxu0 %v129
    %139 = vmatpush.bf16.xpose.msra.mxu0 %v128
    %140 = vmatmul.bf16.gmra.mxu0 %v118
    %v141 = vpop.f32.mrf.mxu0
    %v142 = vadd.f32 0.0, %v141
    %v143 = vpop.f32.mrf.mxu0
    %v144 = vadd.f32 0.0, %v143
    %145 = vmatmul.bf16.gmra.mxu0 %v119
    %v146 = vpop.f32.mrf.mxu0
    %v147 = vadd.f32 0.0, %v146
    %v148 = vpop.f32.mrf.mxu0
    %149 = vdwg.mxu0
    %p150 = scmp.eq.s32.totalorder 0, 0
    // Predicated region
    $region18: #{tpu_custom_call.1} parent=1 // pred_check
      %p151 = pneg %p150
    $region19: #{tpu_custom_call.1} parent=1 // pred_check_branch
      %153 = sbr.rel (%p151) target = $region21
    $region20: #{tpu_custom_call.1} parent=1 // pred_region
      %v154 = vld [vmem:[%s96] sm:$0xff]
      %v155 = vld [vmem:[%s96 + $0x8] sm:$0xff]
      %v156 = vld [vmem:[%s96 + $0x10] sm:$0xff]
      %v157 = vld [vmem:[%s103] sm:$0x1]
      %v158 = vld [vmem:[%s103 + $0x1] sm:$0x1]
      %v159 = vmul.f32 %v142, 0.2
      %v160 = vmul.f32 %v144, 0.2
      %v161 = vmul.f32 %v147, 0.2
      %163 = vset.pattern.permute.xlu0 0
      %164 = vperm.xlu0 %163, %v154
      %v165 = vpop.permute.xlu0 %164
      %168 = vset.pattern.permute.xlu0 0
      %169 = vperm.xlu0 %168, %v155
      %v170 = vpop.permute.xlu0 %169
      %173 = vset.pattern.permute.xlu0 0
      %174 = vperm.xlu0 %173, %v156
      %v175 = vpop.permute.xlu0 %174
      %v177 = vadd.f32 %v159, %v165
      %v178 = vadd.f32 %v160, %v170
      %v179 = vadd.f32 %v161, %v175
      %v180 = vperm.slane %v157, 0
      %v181 = vadd.f32 %v177, %v180
      %v182 = vadd.f32 %v178, %v180
      %v183 = vadd.f32 %v179, %v180
      %v184 = vmul.f32 %v181, 1.442695
      %v185 = vpow.pop %v184
      %v186 = vmul.f32 %v182, 1.442695
      %v187 = vpow.pop %v186
      %v188 = vmul.f32 %v183, 1.442695
      %v189 = vpow.pop %v188
      %190 = vset.pattern.permute.xlu0 1
      %191 = vperm.xlu0 %190, %v154
      %v192 = vpop.permute.xlu0 %191
      %194 = vset.pattern.permute.xlu0 1
      %195 = vperm.xlu0 %194, %v155
      %v196 = vpop.permute.xlu0 %195
      %198 = vset.pattern.permute.xlu0 1
      %199 = vperm.xlu0 %198, %v156
      %v200 = vpop.permute.xlu0 %199
      %v202 = vmul.f32 %v185, %v192
      %v203 = vmul.f32 %v187, %v196
      %v204 = vmul.f32 %v189, %v200
      %vm205 = vcmask 195584
      %v206 = vsel %vm205, %v202, 0.0
      %v207 = vsel %vm205, %v203, 0.0
      %v208 = vadd.f32 %v206, %v207
      %v209 = vsel %vm205, %v204, 0.0
      %v210 = vadd.f32 %v208, %v209
      %v211 = vrot.slane %v210, 4
      %v212 = vadd.f32 %v210, %v211
      %v213 = vrot.slane %v212, 2
      %v214 = vadd.f32 %v212, %v213
      %v215 = vrot.slane %v214, 1
      %v216 = vadd.f32 %v214, %v215
      %v217 = vmul.f32 %v216, %v158
      %s218 = sld [smem:[#allocation4]]
      %s219 = sld [smem:[#allocation5]]
      %p220 = scmp.gt.s32.totalorder %s219, %s218
      %s221 = scalar_select %p220, 2.0, 1.0
      %v222 = vstv %s221
      %v223 = vmul.f32 %v222, %v217
      %vm224 = vcmask 188416
      %225 = vst.msk [vmem:[#allocation6] sm:$0x1] %vm224, %v223
    $region21: #{tpu_custom_call.1} parent=1 // pred_fallthru
      _
    // Predicated region
    $region22: #{tpu_custom_call.1} parent=1 // pred_check
      _
    $region23: #{tpu_custom_call.1} parent=1 // pred_check_branch
      %227 = sbr.rel (0) target = $region25
    $region24: #{tpu_custom_call.1} parent=1 // pred_region
      %229 = vsyncadd [#allocation7], 0
      %s231 = sshll.u32 [#allocation6], 4
      %s232 = int_to_ptr.vmem [resolvable:$true] %s231
      %s233 = sshll.u32 %s6, 4
      %s234 = int_to_ptr.hbm [resolvable:$true] %s233
      %236 = dma.vmem_to_hbm [thread:$0]  %s232, 16, %s234, [#allocation7]
    $region25: #{tpu_custom_call.1} parent=1 // pred_fallthru
      _
    // Predicated region
    $region26: #{tpu_custom_call.1} parent=1 // pred_check
      _
    $region27: #{tpu_custom_call.1} parent=1 // pred_check_branch
      %238 = sbr.rel (0) target = $region29
    $region28: #{tpu_custom_call.1} parent=1 // pred_region
      %240 = dma.done [#allocation7], 16
    $region29: #{tpu_custom_call.1} parent=1 // pred_fallthru
      _
    %241 = vsyncpa [#allocation7], 1

</llo_original>
